<compile_context>
chip_gen: v7x
topology: tpu7x:2x2x1
jax: 0.10.0
libtpu: 0.0.40
codegen_flags: <defaults>
</compile_context>

<pallas_src>
import jax
import jax.numpy as jnp
from jax.experimental import pallas as pl
from jax.experimental.pallas import tpu as pltpu

B, S, H, V = 2, 8, 64, 128          # batch, seq, hidden (v_head is Linear(64,1)), vocab
N = B * S                            # flattened rows processed in one step
DROP_P = 0.1


def ppo_kernel(ids_ref,                      # [N, 1]  int32 token ids
               emb_ref,                      # [V, H]  embedding table
               mask_ref,                     # [N, 1]  attention mask (f32)
               wf_ref, bf_ref,               # [H, H], [1, H]
               wo_ref, bo_ref,               # [H, V], [1, V]
               wv_ref, bv_ref,               # [1, H], [1, 1]   (v_head weight as a row)
               drop_ref,                     # [N, H]  dropout keep/scale mask
               logits_ref,                   # [N, V]
               value_ref):                   # [1, N]  lane-dense value row
    # --- embedding lookup fused into the kernel: one-hot @ table on the MXU ---
    ids = ids_ref[...]                                              # [N, 1]
    cols = jax.lax.broadcasted_iota(jnp.int32, (N, V), 1)           # [N, V]
    onehot = (cols == ids).astype(jnp.float32)                      # [N, V]
    x = jnp.dot(onehot, emb_ref[...],
                preferred_element_type=jnp.float32)                 # [N, H]

    # --- synthetic model_gen.feature: dense + tanh, masked positions zeroed ---
    # TODO(synk): real model_gen backbone is opaque in the reference; replaced
    # by a single dense tanh feature layer with multiplicative attention_mask.
    h = jnp.tanh(jnp.dot(x, wf_ref[...],
                         preferred_element_type=jnp.float32) + bf_ref[...])   # [N, H]
    h = h * mask_ref[...]

    # --- model_gen.fc_out: Linear(H, V) ---
    logits_ref[...] = (jnp.dot(h, wo_ref[...],
                               preferred_element_type=jnp.float32)
                       + bo_ref[...])                               # [N, V]

    # --- v_head: Dropout(0.1) (precomputed scale mask) + Linear(H, 1) ---
    # VPU multiply + lane reduction instead of an N=1 MXU matmul.
    h_drop = h * drop_ref[...]                                      # [N, H]
    val = jnp.sum(h_drop * wv_ref[...], axis=-1, keepdims=True) + bv_ref[...]  # [N, 1]
    value_ref[...] = val.T                                          # [1, N] lane-dense


def init_params(key):
    ks = jax.random.split(key, 6)
    return {
        "embed":  jax.random.normal(ks[0], (V, H), jnp.float32) * 0.02,
        "w_feat": jax.random.normal(ks[1], (H, H), jnp.float32) * (1.0 / jnp.sqrt(H)),
        "b_feat": jnp.zeros((1, H), jnp.float32),
        "w_out":  jax.random.normal(ks[2], (H, V), jnp.float32) * (1.0 / jnp.sqrt(H)),
        "b_out":  jnp.zeros((1, V), jnp.float32),
        "w_v":    jax.random.normal(ks[3], (1, H), jnp.float32) * (1.0 / jnp.sqrt(H)),
        "b_v":    jnp.zeros((1, 1), jnp.float32),
    }


def model_ppo_forward(input_ids, attention_mask, params, dropout_key, train=True):
    bsz, seq = input_ids.shape
    n = bsz * seq

    ids2d = input_ids.reshape(n, 1).astype(jnp.int32)
    mask2d = attention_mask.astype(jnp.float32).reshape(n, 1)

    # Train-mode dropout: keep mask with prob 0.9, inverted scaling 1/(1-p).
    # Generated in the wrapper (pltpu.prng_* is TPU-Mosaic-only and does not
    # lower under CPU/interpret), paid exactly once per forward call.
    if train:
        keep = jax.random.bernoulli(dropout_key, 1.0 - DROP_P, (n, H))
        drop_scale = keep.astype(jnp.float32) * (1.0 / (1.0 - DROP_P))
    else:
        drop_scale = jnp.ones((n, H), jnp.float32)

    # Single grid step: whole flattened batch fits trivially in VMEM (<1 MiB).
    in_specs = [
        pl.BlockSpec((n, 1), lambda i: (0, 0)),   # ids
        pl.BlockSpec((V, H), lambda i: (0, 0)),   # embed table
        pl.BlockSpec((n, 1), lambda i: (0, 0)),   # mask
        pl.BlockSpec((H, H), lambda i: (0, 0)),   # w_feat
        pl.BlockSpec((1, H), lambda i: (0, 0)),   # b_feat
        pl.BlockSpec((H, V), lambda i: (0, 0)),   # w_out
        pl.BlockSpec((1, V), lambda i: (0, 0)),   # b_out
        pl.BlockSpec((1, H), lambda i: (0, 0)),   # w_v (row layout)
        pl.BlockSpec((1, 1), lambda i: (0, 0)),   # b_v
        pl.BlockSpec((n, H), lambda i: (0, 0)),   # dropout scale mask
    ]
    out_specs = [
        pl.BlockSpec((n, V), lambda i: (0, 0)),   # logits (flat rows)
        pl.BlockSpec((1, n), lambda i: (0, 0)),   # value (lane-dense row)
    ]

    logits_flat, value_row = pl.pallas_call(
        ppo_kernel,
        grid=(1,),
        in_specs=in_specs,
        out_specs=out_specs,
        out_shape=(jax.ShapeDtypeStruct((n, V), jnp.float32),
                   jax.ShapeDtypeStruct((1, n), jnp.float32)),
        compiler_params=pltpu.CompilerParams(
            dimension_semantics=("arbitrary",)),
    )(ids2d, params["embed"], mask2d,
      params["w_feat"], params["b_feat"],
      params["w_out"], params["b_out"],
      params["w_v"], params["b_v"],
      drop_scale)

    logits = logits_flat.reshape(bsz, seq, V)
    value = value_row.reshape(bsz, seq)       # .squeeze(-1) equivalent -> [B, S]
    return logits, value


if __name__ == "__main__":
    key = jax.random.PRNGKey(0)
    k_param, k_ids, k_drop = jax.random.split(key, 3)

    params = init_params(k_param)
    input_ids = jax.random.randint(k_ids, (B, S), 0, V, dtype=jnp.int32)
    # attention mask: last two positions of batch element 1 are padding
    attention_mask = jnp.ones((B, S), jnp.int32).at[1, -2:].set(0)

    logits, value = model_ppo_forward(input_ids, attention_mask, params,
                                      dropout_key=k_drop, train=True)
    jax.block_until_ready((logits, value))

    assert logits.shape == (B, S, V) and logits.dtype == jnp.float32
    assert value.shape == (B, S) and value.dtype == jnp.float32
    assert bool(jnp.all(jnp.isfinite(logits))) and bool(jnp.all(jnp.isfinite(value)))
    print("KERNEL_OK")
</pallas_src>

<mosaic_0001>
module attributes {stable_mosaic.version = 11 : i64} {
  func.func @ppo_kernel(%arg0: i32, %arg1: memref<16x1xi32, #tpu.memory_space<vmem>>, %arg2: memref<128x64xf32, #tpu.memory_space<vmem>>, %arg3: memref<16x1xf32, #tpu.memory_space<vmem>>, %arg4: memref<64x64xf32, #tpu.memory_space<vmem>>, %arg5: memref<1x64xf32, #tpu.memory_space<vmem>>, %arg6: memref<64x128xf32, #tpu.memory_space<vmem>>, %arg7: memref<1x128xf32, #tpu.memory_space<vmem>>, %arg8: memref<1x64xf32, #tpu.memory_space<vmem>>, %arg9: memref<1x1xf32, #tpu.memory_space<vmem>>, %arg10: memref<16x64xf32, #tpu.memory_space<vmem>>, %arg11: memref<16x128xf32, #tpu.memory_space<vmem>>, %arg12: memref<1x16xf32, #tpu.memory_space<vmem>>) attributes {dimension_semantics = [#tpu.dimension_semantics<arbitrary>], iteration_bounds = array<i64: 1>, scalar_prefetch = 0 : i64, scratch_operands = 0 : i64, tpu.core_type = #tpu.core_type<tc>, window_params = [{pipeline_mode = #tpu.pipeline_mode<synchronous>, transform_indices = @transform_0, window_bounds = array<i64: 16, 1>}, {pipeline_mode = #tpu.pipeline_mode<synchronous>, transform_indices = @transform_1, window_bounds = array<i64: 128, 64>}, {pipeline_mode = #tpu.pipeline_mode<synchronous>, transform_indices = @transform_2, window_bounds = array<i64: 16, 1>}, {pipeline_mode = #tpu.pipeline_mode<synchronous>, transform_indices = @transform_3, window_bounds = array<i64: 64, 64>}, {pipeline_mode = #tpu.pipeline_mode<synchronous>, transform_indices = @transform_4, window_bounds = array<i64: 1, 64>}, {pipeline_mode = #tpu.pipeline_mode<synchronous>, transform_indices = @transform_5, window_bounds = array<i64: 64, 128>}, {pipeline_mode = #tpu.pipeline_mode<synchronous>, transform_indices = @transform_6, window_bounds = array<i64: 1, 128>}, {pipeline_mode = #tpu.pipeline_mode<synchronous>, transform_indices = @transform_7, window_bounds = array<i64: 1, 64>}, {pipeline_mode = #tpu.pipeline_mode<synchronous>, transform_indices = @transform_8, window_bounds = array<i64: 1, 1>}, {pipeline_mode = #tpu.pipeline_mode<synchronous>, transform_indices = @transform_9, window_bounds = array<i64: 16, 64>}, {pipeline_mode = #tpu.pipeline_mode<synchronous>, transform_indices = @transform_10, window_bounds = array<i64: 16, 128>}, {pipeline_mode = #tpu.pipeline_mode<synchronous>, transform_indices = @transform_11, window_bounds = array<i64: 1, 16>}]} {
    %c0 = arith.constant 0 : index
    %c0_0 = arith.constant 0 : index
    %0 = vector.load %arg1[%c0, %c0_0] : memref<16x1xi32, #tpu.memory_space<vmem>>, vector<16x1xi32>
    %1 = tpu.iota {dimensions = array<i32: 1>} : vector<16x128xi32>
    %2 = vector.broadcast %0 : vector<16x1xi32> to vector<16x128xi32>
    %3 = arith.cmpi eq, %1, %2 : vector<16x128xi32>
    %4 = arith.extui %3 : vector<16x128xi1> to vector<16x128xi32>
    %5 = arith.sitofp %4 : vector<16x128xi32> to vector<16x128xf32>
    %c0_1 = arith.constant 0 : index
    %c0_2 = arith.constant 0 : index
    %6 = vector.load %arg2[%c0_1, %c0_2] : memref<128x64xf32, #tpu.memory_space<vmem>>, vector<128x64xf32>
    %cst = arith.constant dense<0.000000e+00> : vector<16x64xf32>
    %7 = tpu.matmul %5, %6, %cst {dimension_numbers = #tpu.dot_dimension_numbers<[1], [0], [0], [1], [0, 0, 1, 1], [], []>} : vector<16x128xf32>, vector<128x64xf32>, vector<16x64xf32> -> vector<16x64xf32>
    %c0_3 = arith.constant 0 : index
    %c0_4 = arith.constant 0 : index
    %8 = vector.load %arg4[%c0_3, %c0_4] : memref<64x64xf32, #tpu.memory_space<vmem>>, vector<64x64xf32>
    %cst_5 = arith.constant dense<0.000000e+00> : vector<16x64xf32>
    %9 = tpu.matmul %7, %8, %cst_5 {dimension_numbers = #tpu.dot_dimension_numbers<[1], [0], [0], [1], [0, 0, 1, 1], [], []>} : vector<16x64xf32>, vector<64x64xf32>, vector<16x64xf32> -> vector<16x64xf32>
    %c0_6 = arith.constant 0 : index
    %c0_7 = arith.constant 0 : index
    %10 = vector.load %arg5[%c0_6, %c0_7] : memref<1x64xf32, #tpu.memory_space<vmem>>, vector<1x64xf32>
    %11 = vector.broadcast %10 : vector<1x64xf32> to vector<16x64xf32>
    %12 = arith.addf %9, %11 : vector<16x64xf32>
    %13 = math.tanh %12 : vector<16x64xf32>
    %c0_8 = arith.constant 0 : index
    %c0_9 = arith.constant 0 : index
    %14 = vector.load %arg3[%c0_8, %c0_9] : memref<16x1xf32, #tpu.memory_space<vmem>>, vector<16x1xf32>
    %15 = vector.broadcast %14 : vector<16x1xf32> to vector<16x64xf32>
    %16 = arith.mulf %13, %15 : vector<16x64xf32>
    %c0_10 = arith.constant 0 : index
    %c0_11 = arith.constant 0 : index
    %17 = vector.load %arg6[%c0_10, %c0_11] : memref<64x128xf32, #tpu.memory_space<vmem>>, vector<64x128xf32>
    %cst_12 = arith.constant dense<0.000000e+00> : vector<16x128xf32>
    %18 = tpu.matmul %16, %17, %cst_12 {dimension_numbers = #tpu.dot_dimension_numbers<[1], [0], [0], [1], [0, 0, 1, 1], [], []>} : vector<16x64xf32>, vector<64x128xf32>, vector<16x128xf32> -> vector<16x128xf32>
    %c0_13 = arith.constant 0 : index
    %c0_14 = arith.constant 0 : index
    %19 = vector.load %arg7[%c0_13, %c0_14] : memref<1x128xf32, #tpu.memory_space<vmem>>, vector<1x128xf32>
    %20 = vector.broadcast %19 : vector<1x128xf32> to vector<16x128xf32>
    %21 = arith.addf %18, %20 : vector<16x128xf32>
    %c0_15 = arith.constant 0 : index
    %c0_16 = arith.constant 0 : index
    %22 = vector.load %arg11[%c0_15, %c0_16] : memref<16x128xf32, #tpu.memory_space<vmem>>, vector<16x128xf32>
    tpu.vector_store %arg11[%c0_15, %c0_16], %21 {strides = array<i32>} : memref<16x128xf32, #tpu.memory_space<vmem>>, vector<16x128xf32>,
    %c0_17 = arith.constant 0 : index
    %c0_18 = arith.constant 0 : index
    %23 = vector.load %arg10[%c0_17, %c0_18] : memref<16x64xf32, #tpu.memory_space<vmem>>, vector<16x64xf32>
    %24 = arith.mulf %16, %23 : vector<16x64xf32>
    %c0_19 = arith.constant 0 : index
    %c0_20 = arith.constant 0 : index
    %25 = vector.load %arg8[%c0_19, %c0_20] : memref<1x64xf32, #tpu.memory_space<vmem>>, vector<1x64xf32>
    %26 = vector.broadcast %25 : vector<1x64xf32> to vector<16x64xf32>
    %27 = arith.mulf %24, %26 : vector<16x64xf32>
    %cst_21 = arith.constant dense<0.000000e+00> : vector<16xf32>
    %28 = vector.multi_reduction <add>, %27, %cst_21 [1] : vector<16x64xf32> to vector<16xf32>
    %29 = vector.shape_cast %28 : vector<16xf32> to vector<16x1xf32>
    %c0_22 = arith.constant 0 : index
    %c0_23 = arith.constant 0 : index
    %30 = vector.load %arg9[%c0_22, %c0_23] : memref<1x1xf32, #tpu.memory_space<vmem>>, vector<1x1xf32>
    %31 = vector.broadcast %30 : vector<1x1xf32> to vector<16x1xf32>
    %32 = arith.addf %29, %31 : vector<16x1xf32>
    %33 = tpu.transpose %32, [1, 0] : vector<16x1xf32> -> vector<1x16xf32>
    %c0_24 = arith.constant 0 : index
    %c0_25 = arith.constant 0 : index
    %34 = vector.load %arg12[%c0_24, %c0_25] : memref<1x16xf32, #tpu.memory_space<vmem>>, vector<1x16xf32>
    tpu.vector_store %arg12[%c0_24, %c0_25], %33 {strides = array<i32>} : memref<1x16xf32, #tpu.memory_space<vmem>>, vector<1x16xf32>,
    return
  }
  func.func @transform_0(%arg0: i32) -> (i32, i32) {
    %c0_i32 = arith.constant 0 : i32
    %c0_i32_0 = arith.constant 0 : i32
    %c0_i32_1 = arith.constant 0 : i32
    return %c0_i32, %c0_i32_0 : i32, i32
  }
  func.func @transform_1(%arg0: i32) -> (i32, i32) {
    %c0_i32 = arith.constant 0 : i32
    %c0_i32_0 = arith.constant 0 : i32
    %c0_i32_1 = arith.constant 0 : i32
    return %c0_i32, %c0_i32_0 : i32, i32
  }
  func.func @transform_2(%arg0: i32) -> (i32, i32) {
    %c0_i32 = arith.constant 0 : i32
    %c0_i32_0 = arith.constant 0 : i32
    %c0_i32_1 = arith.constant 0 : i32
    return %c0_i32, %c0_i32_0 : i32, i32
  }
  func.func @transform_3(%arg0: i32) -> (i32, i32) {
    %c0_i32 = arith.constant 0 : i32
    %c0_i32_0 = arith.constant 0 : i32
    %c0_i32_1 = arith.constant 0 : i32
    return %c0_i32, %c0_i32_0 : i32, i32
  }
  func.func @transform_4(%arg0: i32) -> (i32, i32) {
    %c0_i32 = arith.constant 0 : i32
    %c0_i32_0 = arith.constant 0 : i32
    %c0_i32_1 = arith.constant 0 : i32
    return %c0_i32, %c0_i32_0 : i32, i32
  }
  func.func @transform_5(%arg0: i32) -> (i32, i32) {
    %c0_i32 = arith.constant 0 : i32
    %c0_i32_0 = arith.constant 0 : i32
    %c0_i32_1 = arith.constant 0 : i32
    return %c0_i32, %c0_i32_0 : i32, i32
  }
  func.func @transform_6(%arg0: i32) -> (i32, i32) {
    %c0_i32 = arith.constant 0 : i32
    %c0_i32_0 = arith.constant 0 : i32
    %c0_i32_1 = arith.constant 0 : i32
    return %c0_i32, %c0_i32_0 : i32, i32
  }
  func.func @transform_7(%arg0: i32) -> (i32, i32) {
    %c0_i32 = arith.constant 0 : i32
    %c0_i32_0 = arith.constant 0 : i32
    %c0_i32_1 = arith.constant 0 : i32
    return %c0_i32, %c0_i32_0 : i32, i32
  }
  func.func @transform_8(%arg0: i32) -> (i32, i32) {
    %c0_i32 = arith.constant 0 : i32
    %c0_i32_0 = arith.constant 0 : i32
    %c0_i32_1 = arith.constant 0 : i32
    return %c0_i32, %c0_i32_0 : i32, i32
  }
  func.func @transform_9(%arg0: i32) -> (i32, i32) {
    %c0_i32 = arith.constant 0 : i32
    %c0_i32_0 = arith.constant 0 : i32
    %c0_i32_1 = arith.constant 0 : i32
    return %c0_i32, %c0_i32_0 : i32, i32
  }
  func.func @transform_10(%arg0: i32) -> (i32, i32) {
    %c0_i32 = arith.constant 0 : i32
    %c0_i32_0 = arith.constant 0 : i32
    %c0_i32_1 = arith.constant 0 : i32
    return %c0_i32, %c0_i32_0 : i32, i32
  }
  func.func @transform_11(%arg0: i32) -> (i32, i32) {
    %c0_i32 = arith.constant 0 : i32
    %c0_i32_0 = arith.constant 0 : i32
    %c0_i32_1 = arith.constant 0 : i32
    return %c0_i32, %c0_i32_0 : i32, i32
  }
}

</mosaic_0001>

<llo_original>
// kernel: tpu_custom_call.1
$region0: #{tpu_custom_call.1}
  #allocation0 [shape = 'u32[]', space=smem, size = 0x4, offset = 0x4, fixed_abs, tag = 'smem constant byte address 0x4 - core index']
  #allocation1 [shape = 'u32[144,128]{1,0:T(1,128)}', space=vmem, size = 0x12000, scoped, tag = 'internal scratch']
  #allocation2 [shape = 'f32[1,1]{1,0:T(1,128)S(1)}', space=vmem, size = 0x200, scoped, tag = 'scoped memory for tpu_custom_call.1']
  %s0 = inlined_call_operand.vmem [shape: s32[16,1], index: 0, kind: input, shape index: {}]
  %s1 = inlined_call_operand.vmem [shape: f32[128,64], index: 1, kind: input, shape index: {}]
  %s2 = inlined_call_operand.vmem [shape: f32[16,1], index: 2, kind: input, shape index: {}]
  %s3 = inlined_call_operand.vmem [shape: f32[64,64], index: 3, kind: input, shape index: {}]
  %s4 = inlined_call_operand.vmem [shape: f32[1,64], index: 4, kind: input, shape index: {}]
  %s5 = inlined_call_operand.vmem [shape: f32[64,128], index: 5, kind: input, shape index: {}]
  %s6 = inlined_call_operand.vmem [shape: f32[1,128], index: 6, kind: input, shape index: {}]
  %s7 = inlined_call_operand.vmem [shape: f32[1,64], index: 7, kind: input, shape index: {}]
  %s8 = inlined_call_operand.<no memory space> [shape: f32[1,1], index: 8, kind: input, shape index: {}]
  %s9 = inlined_call_operand.vmem [shape: f32[16,64], index: 9, kind: input, shape index: {}]
  %s10 = inlined_call_operand.hbm [shape: f32[16,128], index: 10, kind: output, shape index: {0}]
  %s11 = inlined_call_operand.hbm [shape: f32[1,16], index: 11, kind: output, shape index: {1}]
  %12 = xla_tuple %s10, %s11
  %s13 = sld [smem:[#allocation0]]
  $region58: #{tpu_custom_call.1} parent=0
    _
  %s15 = ssub.s32 1, %s13
  %s16 = scalar_select 0, %s15, %s13
  %v17 = vstv %s8
  %18 = vst [vmem:[#allocation2] sm:$0x1] %v17
  $region1: #{tpu_custom_call.1} parent=0
    #allocation3 [shape = 'u8[8192]{0}', space=vmem, size = 0x2000, scoped, tag = 'output window, operand 0, single buffered']
    #allocation4 [shape = 's32[1]{0}', space=sflag, size = 0x4, scoped, tag = 'scoped memory for tpu_custom_call.1']
    #allocation5 [shape = 'u8[512]{0}', space=vmem, size = 0x400, scoped, tag = 'output window, operand 1, single buffered']
    #allocation6 [shape = 's32[1]{0}', space=sflag, size = 0x4, scoped, tag = 'scoped memory for tpu_custom_call.1']
    %19 = vsyncpa [#allocation4], 0
    %20 = vsyncpa [#allocation6], 0
    // Predicated region
    $region2: #{tpu_custom_call.1} parent=1 // pred_check
      _
    $region3: #{tpu_custom_call.1} parent=1 // pred_check_branch
      %22 = sbr.rel (0) target = $region5
    $region4: #{tpu_custom_call.1} parent=1 // pred_region
      _
    $region5: #{tpu_custom_call.1} parent=1 // pred_fallthru
      _
    // Predicated region
    $region6: #{tpu_custom_call.1} parent=1 // pred_check
      _
    $region7: #{tpu_custom_call.1} parent=1 // pred_check_branch
      %24 = sbr.rel (0) target = $region9
    $region8: #{tpu_custom_call.1} parent=1 // pred_region
      _
    $region9: #{tpu_custom_call.1} parent=1 // pred_fallthru
      _
    // Predicated region
    $region10: #{tpu_custom_call.1} parent=1 // pred_check
      _
    $region11: #{tpu_custom_call.1} parent=1 // pred_check_branch
      %26 = sbr.rel (0) target = $region13
    $region12: #{tpu_custom_call.1} parent=1 // pred_region
      _
    $region13: #{tpu_custom_call.1} parent=1 // pred_fallthru
      _
    // Predicated region
    $region14: #{tpu_custom_call.1} parent=1 // pred_check
      _
    $region15: #{tpu_custom_call.1} parent=1 // pred_check_branch
      %28 = sbr.rel (0) target = $region17
    $region16: #{tpu_custom_call.1} parent=1 // pred_region
      _
    $region17: #{tpu_custom_call.1} parent=1 // pred_fallthru
      _
    // Predicated region
    $region18: #{tpu_custom_call.1} parent=1 // pred_check
      _
    $region19: #{tpu_custom_call.1} parent=1 // pred_check_branch
      %30 = sbr.rel (0) target = $region21
    $region20: #{tpu_custom_call.1} parent=1 // pred_region
      _
    $region21: #{tpu_custom_call.1} parent=1 // pred_fallthru
      _
    // Predicated region
    $region22: #{tpu_custom_call.1} parent=1 // pred_check
      _
    $region23: #{tpu_custom_call.1} parent=1 // pred_check_branch
      %32 = sbr.rel (0) target = $region25
    $region24: #{tpu_custom_call.1} parent=1 // pred_region
      _
    $region25: #{tpu_custom_call.1} parent=1 // pred_fallthru
      _
    // Predicated region
    $region26: #{tpu_custom_call.1} parent=1 // pred_check
      _
    $region27: #{tpu_custom_call.1} parent=1 // pred_check_branch
      %34 = sbr.rel (0) target = $region29
    $region28: #{tpu_custom_call.1} parent=1 // pred_region
      _
    $region29: #{tpu_custom_call.1} parent=1 // pred_fallthru
      _
    // Predicated region
    $region30: #{tpu_custom_call.1} parent=1 // pred_check
      _
    $region31: #{tpu_custom_call.1} parent=1 // pred_check_branch
      %36 = sbr.rel (0) target = $region33
    $region32: #{tpu_custom_call.1} parent=1 // pred_region
      _
    $region33: #{tpu_custom_call.1} parent=1 // pred_fallthru
      _
    // Predicated region
    $region34: #{tpu_custom_call.1} parent=1 // pred_check
      _
    $region35: #{tpu_custom_call.1} parent=1 // pred_check_branch
      %38 = sbr.rel (0) target = $region37
    $region36: #{tpu_custom_call.1} parent=1 // pred_region
      _
    $region37: #{tpu_custom_call.1} parent=1 // pred_fallthru
      _
    // Predicated region
    $region38: #{tpu_custom_call.1} parent=1 // pred_check
      _
    $region39: #{tpu_custom_call.1} parent=1 // pred_check_branch
      %40 = sbr.rel (0) target = $region41
    $region40: #{tpu_custom_call.1} parent=1 // pred_region
      _
    $region41: #{tpu_custom_call.1} parent=1 // pred_fallthru
      _
    %v41 = vld [vmem:[%s0] sm:$0xff]
    %v42 = vld [vmem:[%s0 + $0x8] sm:$0xff]
    %v43 = vlaneseq
    %v44 = vand.u32 %v43, 127
    %45 = vset.pattern.permute.xlu0 0
    %46 = vperm.xlu0 %45, %v41
    %v47 = vpop.permute.xlu0 %46
    %48 = vset.pattern.permute.xlu0 0
    %49 = vperm.xlu0 %48, %v42
    %v50 = vpop.permute.xlu0 %49
    %vm51 = vcmp.eq.s32.totalorder %v44, %v47
    %vm52 = vcmp.eq.s32.totalorder %v44, %v50
    %v53 = vsel %vm51, 1, 0
    %v54 = vsel %vm52, 1, 0
    %v55 = vcvt.s32.f32 %v53
    %v56 = vcvt.s32.f32 %v54
    %v57 = vld [vmem:[%s1] sm:$0xff]
    %v58 = vld [vmem:[%s1 + $0x8] sm:$0xff]
    %v59 = vld [vmem:[%s1 + $0x10] sm:$0xff]
    %v60 = vld [vmem:[%s1 + $0x18] sm:$0xff]
    %v61 = vld [vmem:[%s1 + $0x20] sm:$0xff]
    %v62 = vld [vmem:[%s1 + $0x28] sm:$0xff]
    %v63 = vld [vmem:[%s1 + $0x30] sm:$0xff]
    %v64 = vld [vmem:[%s1 + $0x38] sm:$0xff]
    %v65 = vld [vmem:[%s1 + $0x40] sm:$0xff]
    %v66 = vld [vmem:[%s1 + $0x48] sm:$0xff]
    %v67 = vld [vmem:[%s1 + $0x50] sm:$0xff]
    %v68 = vld [vmem:[%s1 + $0x58] sm:$0xff]
    %v69 = vld [vmem:[%s1 + $0x60] sm:$0xff]
    %v70 = vld [vmem:[%s1 + $0x68] sm:$0xff]
    %v71 = vld [vmem:[%s1 + $0x70] sm:$0xff]
    %v72 = vld [vmem:[%s1 + $0x78] sm:$0xff]
    %73 = vmatprep.subr.mxu0 0.0
    %74 = vmatpush1.msra.mxu0 %v57
    %75 = vmatprep.subr.mxu0 0.0
    %76 = vmatpush1.msra.mxu0 %v58
    %77 = vmatprep.subr.mxu0 0.0
    %78 = vmatpush1.msra.mxu0 %v59
    %79 = vmatprep.subr.mxu0 0.0
    %80 = vmatpush1.msra.mxu0 %v60
    %81 = vmatprep.subr.mxu0 0.0
    %82 = vmatpush1.msra.mxu0 %v61
    %83 = vmatprep.subr.mxu0 0.0
    %84 = vmatpush1.msra.mxu0 %v62
    %85 = vmatprep.subr.mxu0 0.0
    %86 = vmatpush1.msra.mxu0 %v63
    %87 = vmatprep.subr.mxu0 0.0
    %88 = vmatpush1.msra.mxu0 %v64
    %89 = vmatprep.subr.mxu0 0.0
    %90 = vmatpush1.msra.mxu0 %v65
    %91 = vmatprep.subr.mxu0 0.0
    %92 = vmatpush1.msra.mxu0 %v66
    %93 = vmatprep.subr.mxu0 0.0
    %94 = vmatpush1.msra.mxu0 %v67
    %95 = vmatprep.subr.mxu0 0.0
    %96 = vmatpush1.msra.mxu0 %v68
    %97 = vmatprep.subr.mxu0 0.0
    %98 = vmatpush1.msra.mxu0 %v69
    %99 = vmatprep.subr.mxu0 0.0
    %100 = vmatpush1.msra.mxu0 %v70
    %101 = vmatprep.subr.mxu0 0.0
    %102 = vmatpush1.msra.mxu0 %v71
    %103 = vmatprep.subr.mxu0 0.0
    %104 = vmatpush1.msra.mxu0 %v72
    %105 = vmatprep.subr.mxu0 0.0
    %106 = vmatpush1.msra.mxu0 0.0
    %107 = vmatprep.subr.mxu0 0.0
    %108 = vmatpush1.msra.mxu0 0.0
    %109 = vmatprep.subr.mxu0 0.0
    %110 = vmatpush1.msra.mxu0 0.0
    %111 = vmatprep.subr.mxu0 0.0
    %112 = vmatpush1.msra.mxu0 0.0
    %113 = vmatprep.subr.mxu0 0.0
    %114 = vmatpush1.msra.mxu0 0.0
    %115 = vmatprep.subr.mxu0 0.0
    %116 = vmatpush1.msra.mxu0 0.0
    %117 = vmatprep.subr.mxu0 0.0
    %118 = vmatpush1.msra.mxu0 0.0
    %119 = vmatprep.subr.mxu0 0.0
    %120 = vmatpush1.msra.mxu0 0.0
    %121 = vmatprep.subr.mxu0 0.0
    %122 = vmatpush1.msra.mxu0 0.0
    %123 = vmatprep.subr.mxu0 0.0
    %124 = vmatpush1.msra.mxu0 0.0
    %125 = vmatprep.subr.mxu0 0.0
    %126 = vmatpush1.msra.mxu0 0.0
    %127 = vmatprep.subr.mxu0 0.0
    %128 = vmatpush1.msra.mxu0 0.0
    %129 = vmatprep.subr.mxu0 0.0
    %130 = vmatpush1.msra.mxu0 0.0
    %131 = vmatprep.subr.mxu0 0.0
    %132 = vmatpush1.msra.mxu0 0.0
    %133 = vmatprep.subr.mxu0 0.0
    %134 = vmatpush1.msra.mxu0 0.0
    %135 = vmatprep.subr.mxu0 0.0
    %136 = vmatpush1.msra.mxu0 0.0
    %137 = vmatprep.mubr.f32.mxu0 0.0
    %138 = vmatmul.mubr.f32.gmra.mrb[0].mxu0 %v55
    %v139 = vpop.f32.mrb[0].mxu0
    %v140 = vadd.f32 0.0, %v139
    %v141 = vpop.f32.mrb[0].mxu0
    %142 = vmatprep.mubr.f32.mxu0 0.0
    %143 = vmatmul.mubr.f32.gmra.mrb[0].mxu0 %v56
    %v144 = vpop.f32.mrb[0].mxu0
    %v145 = vadd.f32 0.0, %v144
    %v146 = vpop.f32.mrb[0].mxu0
    %147 = vdwg.mxu0
    %v148 = vld [vmem:[%s3] sm:$0xff]
    %v149 = vld [vmem:[%s3 + $0x8] sm:$0xff]
    %v150 = vld [vmem:[%s3 + $0x10] sm:$0xff]
    %v151 = vld [vmem:[%s3 + $0x18] sm:$0xff]
    %v152 = vld [vmem:[%s3 + $0x20] sm:$0xff]
    %v153 = vld [vmem:[%s3 + $0x28] sm:$0xff]
    %v154 = vld [vmem:[%s3 + $0x30] sm:$0xff]
    %v155 = vld [vmem:[%s3 + $0x38] sm:$0xff]
    %v156 = vld [vmem:[%s4] sm:$0x1]
    %v158 = vlaneseq
    %v159 = vshrl.u32 %v158, 7
    %v160 = vsub.s32 0, %v159
    %v161 = vrot.slane %v156, %v160
    %vm163 = vcmask 523264
    %v165 = vsel %vm163, %v140, 0
    %v168 = vsel %vm163, %v145, 0
    %170 = vmatprep.subr.mxu0 0.0
    %171 = vmatpush1.msra.mxu0 %v148
    %172 = vmatprep.subr.mxu0 0.0
    %173 = vmatpush1.msra.mxu0 %v149
    %174 = vmatprep.subr.mxu0 0.0
    %175 = vmatpush1.msra.mxu0 %v150
    %176 = vmatprep.subr.mxu0 0.0
    %177 = vmatpush1.msra.mxu0 %v151
    %178 = vmatprep.subr.mxu0 0.0
    %179 = vmatpush1.msra.mxu0 %v152
    %180 = vmatprep.subr.mxu0 0.0
    %181 = vmatpush1.msra.mxu0 %v153
    %182 = vmatprep.subr.mxu0 0.0
    %183 = vmatpush1.msra.mxu0 %v154
    %184 = vmatprep.subr.mxu0 0.0
    %185 = vmatpush1.msra.mxu0 %v155
    %186 = vmatprep.subr.mxu0 0.0
    %187 = vmatpush1.msra.mxu0 0.0
    %188 = vmatprep.subr.mxu0 0.0
    %189 = vmatpush1.msra.mxu0 0.0
    %190 = vmatprep.subr.mxu0 0.0
    %191 = vmatpush1.msra.mxu0 0.0
    %192 = vmatprep.subr.mxu0 0.0
    %193 = vmatpush1.msra.mxu0 0.0
    %194 = vmatprep.subr.mxu0 0.0
    %195 = vmatpush1.msra.mxu0 0.0
    %196 = vmatprep.subr.mxu0 0.0
    %197 = vmatpush1.msra.mxu0 0.0
    %198 = vmatprep.subr.mxu0 0.0
    %199 = vmatpush1.msra.mxu0 0.0
    %200 = vmatprep.subr.mxu0 0.0
    %201 = vmatpush1.msra.mxu0 0.0
    %202 = vmatprep.subr.mxu0 0.0
    %203 = vmatpush1.msra.mxu0 0.0
    %204 = vmatprep.subr.mxu0 0.0
    %205 = vmatpush1.msra.mxu0 0.0
    %206 = vmatprep.subr.mxu0 0.0
    %207 = vmatpush1.msra.mxu0 0.0
    %208 = vmatprep.subr.mxu0 0.0
    %209 = vmatpush1.msra.mxu0 0.0
    %210 = vmatprep.subr.mxu0 0.0
    %211 = vmatpush1.msra.mxu0 0.0
    %212 = vmatprep.subr.mxu0 0.0
    %213 = vmatpush1.msra.mxu0 0.0
    %214 = vmatprep.subr.mxu0 0.0
    %215 = vmatpush1.msra.mxu0 0.0
    %216 = vmatprep.subr.mxu0 0.0
    %217 = vmatpush1.msra.mxu0 0.0
    %218 = vmatprep.subr.mxu0 0.0
    %219 = vmatpush1.msra.mxu0 0.0
    %220 = vmatprep.subr.mxu0 0.0
    %221 = vmatpush1.msra.mxu0 0.0
    %222 = vmatprep.subr.mxu0 0.0
    %223 = vmatpush1.msra.mxu0 0.0
    %224 = vmatprep.subr.mxu0 0.0
    %225 = vmatpush1.msra.mxu0 0.0
    %226 = vmatprep.subr.mxu0 0.0
    %227 = vmatpush1.msra.mxu0 0.0
    %228 = vmatprep.subr.mxu0 0.0
    %229 = vmatpush1.msra.mxu0 0.0
    %230 = vmatprep.subr.mxu0 0.0
    %231 = vmatpush1.msra.mxu0 0.0
    %232 = vmatprep.subr.mxu0 0.0
    %233 = vmatpush1.msra.mxu0 0.0
    %234 = vmatprep.mubr.f32.mxu0 0.0
    %235 = vmatmul.mubr.f32.gmra.mrb[0].mxu0 %v165
    %v236 = vpop.f32.mrb[0].mxu0
    %v237 = vadd.f32 %v161, %v236
    %v238 = vpop.f32.mrb[0].mxu0
    %239 = vmatprep.mubr.f32.mxu0 0.0
    %240 = vmatmul.mubr.f32.gmra.mrb[0].mxu0 %v168
    %v241 = vpop.f32.mrb[0].mxu0
    %v242 = vadd.f32 %v161, %v241
    %v243 = vpop.f32.mrb[0].mxu0
    %244 = vdwg.mxu0
    %v245 = vtanh.pop %v237
    %v246 = vtanh.pop %v242
    %v247 = vld [vmem:[%s2] sm:$0xff]
    %v248 = vld [vmem:[%s2 + $0x8] sm:$0xff]
    %250 = vset.pattern.permute.xlu0 0
    %251 = vperm.xlu0 %250, %v247
    %v252 = vpop.permute.xlu0 %251
    %255 = vset.pattern.permute.xlu0 0
    %256 = vperm.xlu0 %255, %v248
    %v257 = vpop.permute.xlu0 %256
    %v259 = vmul.f32 %v245, %v252
    %v260 = vmul.f32 %v246, %v257
    %v261 = vld [vmem:[%s5] sm:$0xff]
    %v262 = vld [vmem:[%s5 + $0x8] sm:$0xff]
    %v263 = vld [vmem:[%s5 + $0x10] sm:$0xff]
    %v264 = vld [vmem:[%s5 + $0x18] sm:$0xff]
    %v265 = vld [vmem:[%s5 + $0x20] sm:$0xff]
    %v266 = vld [vmem:[%s5 + $0x28] sm:$0xff]
    %v267 = vld [vmem:[%s5 + $0x30] sm:$0xff]
    %v268 = vld [vmem:[%s5 + $0x38] sm:$0xff]
    %v269 = vld [vmem:[%s6] sm:$0x1]
    %v271 = vlaneseq
    %v272 = vshrl.u32 %v271, 7
    %v273 = vsub.s32 0, %v272
    %v274 = vrot.slane %v269, %v273
    %v277 = vsel %vm163, %v259, 0
    %v280 = vsel %vm163, %v260, 0
    %282 = vmatprep.subr.mxu0 0.0
    %283 = vmatpush1.msra.mxu0 %v261
    %284 = vmatprep.subr.mxu0 0.0
    %285 = vmatpush1.msra.mxu0 %v262
    %286 = vmatprep.subr.mxu0 0.0
    %287 = vmatpush1.msra.mxu0 %v263
    %288 = vmatprep.subr.mxu0 0.0
    %289 = vmatpush1.msra.mxu0 %v264
    %290 = vmatprep.subr.mxu0 0.0
    %291 = vmatpush1.msra.mxu0 %v265
    %292 = vmatprep.subr.mxu0 0.0
    %293 = vmatpush1.msra.mxu0 %v266
    %294 = vmatprep.subr.mxu0 0.0
    %295 = vmatpush1.msra.mxu0 %v267
    %296 = vmatprep.subr.mxu0 0.0
    %297 = vmatpush1.msra.mxu0 %v268
    %298 = vmatprep.subr.mxu0 0.0
    %299 = vmatpush1.msra.mxu0 0.0
    %300 = vmatprep.subr.mxu0 0.0
    %301 = vmatpush1.msra.mxu0 0.0
    %302 = vmatprep.subr.mxu0 0.0
    %303 = vmatpush1.msra.mxu0 0.0
    %304 = vmatprep.subr.mxu0 0.0
    %305 = vmatpush1.msra.mxu0 0.0
    %306 = vmatprep.subr.mxu0 0.0
    %307 = vmatpush1.msra.mxu0 0.0
    %308 = vmatprep.subr.mxu0 0.0
    %309 = vmatpush1.msra.mxu0 0.0
    %310 = vmatprep.subr.mxu0 0.0
    %311 = vmatpush1.msra.mxu0 0.0
    %312 = vmatprep.subr.mxu0 0.0
    %313 = vmatpush1.msra.mxu0 0.0
    %314 = vmatprep.subr.mxu0 0.0
    %315 = vmatpush1.msra.mxu0 0.0
    %316 = vmatprep.subr.mxu0 0.0
    %317 = vmatpush1.msra.mxu0 0.0
    %318 = vmatprep.subr.mxu0 0.0
    %319 = vmatpush1.msra.mxu0 0.0
    %320 = vmatprep.subr.mxu0 0.0
    %321 = vmatpush1.msra.mxu0 0.0
    %322 = vmatprep.subr.mxu0 0.0
    %323 = vmatpush1.msra.mxu0 0.0
    %324 = vmatprep.subr.mxu0 0.0
    %325 = vmatpush1.msra.mxu0 0.0
    %326 = vmatprep.subr.mxu0 0.0
    %327 = vmatpush1.msra.mxu0 0.0
    %328 = vmatprep.subr.mxu0 0.0
    %329 = vmatpush1.msra.mxu0 0.0
    %330 = vmatprep.subr.mxu0 0.0
    %331 = vmatpush1.msra.mxu0 0.0
    %332 = vmatprep.subr.mxu0 0.0
    %333 = vmatpush1.msra.mxu0 0.0
    %334 = vmatprep.subr.mxu0 0.0
    %335 = vmatpush1.msra.mxu0 0.0
    %336 = vmatprep.subr.mxu0 0.0
    %337 = vmatpush1.msra.mxu0 0.0
    %338 = vmatprep.subr.mxu0 0.0
    %339 = vmatpush1.msra.mxu0 0.0
    %340 = vmatprep.subr.mxu0 0.0
    %341 = vmatpush1.msra.mxu0 0.0
    %342 = vmatprep.subr.mxu0 0.0
    %343 = vmatpush1.msra.mxu0 0.0
    %344 = vmatprep.subr.mxu0 0.0
    %345 = vmatpush1.msra.mxu0 0.0
    %346 = vmatprep.mubr.f32.mxu0 0.0
    %347 = vmatmul.mubr.f32.gmra.mrb[0].mxu0 %v277
    %v348 = vpop.f32.mrb[0].mxu0
    %v349 = vadd.f32 %v274, %v348
    %v350 = vpop.f32.mrb[0].mxu0
    %351 = vmatprep.mubr.f32.mxu0 0.0
    %352 = vmatmul.mubr.f32.gmra.mrb[0].mxu0 %v280
    %v353 = vpop.f32.mrb[0].mxu0
    %v354 = vadd.f32 %v274, %v353
    %v355 = vpop.f32.mrb[0].mxu0
    %356 = vdwg.mxu0
    %357 = vst [vmem:[#allocation3] sm:$0xff] %v349
    %358 = vst [vmem:[#allocation3 + $0x8] sm:$0xff] %v354
    %v359 = vld [vmem:[%s9] sm:$0xff]
    %v360 = vld [vmem:[%s9 + $0x8] sm:$0xff]
    %v361 = vmul.f32 %v259, %v359
    %v362 = vmul.f32 %v260, %v360
    %v363 = vld [vmem:[%s7] sm:$0x1]
    %v365 = vlaneseq
    %v366 = vshrl.u32 %v365, 7
    %v367 = vsub.s32 0, %v366
    %v368 = vrot.slane %v363, %v367
    %v370 = vmul.f32 %v361, %v368
    %v371 = vmul.f32 %v362, %v368
    %v372 = vsel %vm163, %v370, 0.0
    %373 = vadd.xlane.f32.xlu0 %v372
    %v374 = vpop.xlane.xlu0 %373
    %v375 = vsel %vm163, %v371, 0.0
    %376 = vadd.xlane.f32.xlu0 %v375
    %v377 = vpop.xlane.xlu0 %376
    %v378 = vld [vmem:[#allocation2] sm:$0x1]
    %v380 = vlaneseq
    %v381 = vshrl.u32 %v380, 7
    %v382 = vsub.s32 0, %v381
    %v383 = vrot.slane %v378, %v382
    %v385 = vadd.f32 %v374, %v383
    %v386 = vadd.f32 %v377, %v383
    %387 = vxpose.xlu0.b32.start [1/16] %v385, 128
    %388 = vxpose.xlu0.b32.cont [2/16] %v386, 128
    %389 = vxpose.xlu0.b32.cont [3/16] 0.0, 128
    %390 = vxpose.xlu0.b32.cont [4/16] 0.0, 128
    %391 = vxpose.xlu0.b32.cont [5/16] 0.0, 128
    %392 = vxpose.xlu0.b32.cont [6/16] 0.0, 128
    %393 = vxpose.xlu0.b32.cont [7/16] 0.0, 128
    %394 = vxpose.xlu0.b32.cont [8/16] 0.0, 128
    %395 = vxpose.xlu0.b32.cont [9/16] 0.0, 128
    %396 = vxpose.xlu0.b32.cont [10/16] 0.0, 128
    %397 = vxpose.xlu0.b32.cont [11/16] 0.0, 128
    %398 = vxpose.xlu0.b32.cont [12/16] 0.0, 128
    %399 = vxpose.xlu0.b32.cont [13/16] 0.0, 128
    %400 = vxpose.xlu0.b32.cont [14/16] 0.0, 128
    %401 = vxpose.xlu0.b32.cont [15/16] 0.0, 128
    %402 = vxpose.xlu0.b32.end [16/16] 0.0, 128
    %v403 = vpop.trf.xlu0
    %v404 = vpop.trf.xlu0
    %v405 = vpop.trf.xlu0
    %v406 = vpop.trf.xlu0
    %v407 = vpop.trf.xlu0
    %v408 = vpop.trf.xlu0
    %v409 = vpop.trf.xlu0
    %v410 = vpop.trf.xlu0
    %v411 = vpop.trf.xlu0
    %v412 = vpop.trf.xlu0
    %v413 = vpop.trf.xlu0
    %v414 = vpop.trf.xlu0
    %v415 = vpop.trf.xlu0
    %v416 = vpop.trf.xlu0
    %v417 = vpop.trf.xlu0
    %v418 = vpop.trf.xlu0
    %vm419 = vcmask 122880
    %420 = vst.msk [vmem:[#allocation5] sm:$0x1] %vm419, %v403
    // Predicated region
    $region42: #{tpu_custom_call.1} parent=1 // pred_check
      _
    $region43: #{tpu_custom_call.1} parent=1 // pred_check_branch
      %422 = sbr.rel (0) target = $region45
    $region44: #{tpu_custom_call.1} parent=1 // pred_region
      %s424 = ssub.s32 256, 256
      %425 = vsyncadd [#allocation4], %s424
      %s426 = sshll.u32 [#allocation3], 4
      %s427 = int_to_ptr.vmem [resolvable:$true] %s426
      %432 = dma.vmem_to_hbm [thread:$0]  %s427, 256, %s10, [#allocation4], 128, 128, 8
    $region45: #{tpu_custom_call.1} parent=1 // pred_fallthru
      _
    // Predicated region
    $region46: #{tpu_custom_call.1} parent=1 // pred_check
      _
    $region47: #{tpu_custom_call.1} parent=1 // pred_check_branch
      %434 = sbr.rel (0) target = $region49
    $region48: #{tpu_custom_call.1} parent=1 // pred_region
      %s436 = ssub.s32 16, 16
      %437 = vsyncadd [#allocation6], %s436
      %s439 = sshll.u32 [#allocation5], 4
      %s440 = int_to_ptr.vmem [resolvable:$true] %s439
      %442 = dma.vmem_to_hbm [thread:$0]  %s440, 16, %s11, [#allocation6]
    $region49: #{tpu_custom_call.1} parent=1 // pred_fallthru
      _
    // Predicated region
    $region50: #{tpu_custom_call.1} parent=1 // pred_check
      _
    $region51: #{tpu_custom_call.1} parent=1 // pred_check_branch
      %444 = sbr.rel (0) target = $region53
    $region52: #{tpu_custom_call.1} parent=1 // pred_region
      %445 = dma.done [#allocation4], 256
    $region53: #{tpu_custom_call.1} parent=1 // pred_fallthru
      _
    // Predicated region
    $region54: #{tpu_custom_call.1} parent=1 // pred_check
      _
    $region55: #{tpu_custom_call.1} parent=1 // pred_check_branch
      %447 = sbr.rel (0) target = $region57
    $region56: #{tpu_custom_call.1} parent=1 // pred_region
      %448 = dma.done [#allocation6], 16
    $region57: #{tpu_custom_call.1} parent=1 // pred_fallthru
      _
    %449 = vsyncpa [#allocation4], 1
    %450 = vsyncpa [#allocation6], 1

</llo_original>
